<compile_context>
chip_gen: v5e
topology: v5e:2x2
jax: 0.10.0
libtpu: 0.0.40
codegen_flags: <defaults>
</compile_context>

<pallas_src>
import functools

import jax
import jax.numpy as jnp
from jax.experimental import pallas as pl
from jax.experimental.pallas import tpu as pltpu

LANE = 128          # TPU lane width (class dim padded to a multiple of this)
SUBLANE_BF16 = 16   # bf16 sublane packing for the batch-tile dimension


def _round_up(x, m):
    return pl.cdiv(x, m) * m


def mlp_kernel(x_ref, w1_ref, b1_ref, w2_ref, b2_ref, w3_ref, b3_ref, o_ref):
    # Layer 1: x @ W1 + b1, ReLU.  x arrives as f32; cast to bf16 on the VPU
    # (hidden under the DMA) so the MXU runs bf16 operands with f32 accum.
    x_bf = x_ref[...].astype(jnp.bfloat16)
    h1 = jnp.dot(x_bf, w1_ref[...], preferred_element_type=jnp.float32)
    h1 = jnp.maximum(h1 + b1_ref[...], 0.0)

    # Layer 2: h1 @ W2 + b2, ReLU
    h2 = jnp.dot(h1.astype(jnp.bfloat16), w2_ref[...],
                 preferred_element_type=jnp.float32)
    h2 = jnp.maximum(h2 + b2_ref[...], 0.0)

    # Layer 3: h2 @ W3 + b3 (logits, no activation); lane-dense bf16 store.
    out = jnp.dot(h2.astype(jnp.bfloat16), w3_ref[...],
                  preferred_element_type=jnp.float32)
    o_ref[...] = (out + b3_ref[...]).astype(o_ref.dtype)


def prepare_params(params):
    """One-time parameter prep (run once, reuse across forward calls):
    zero-pad the class dim of W3/b3 up to a multiple of 128 lanes and cast the
    weights to bf16.  Biases stay f32 (added to the f32 accumulator)."""
    hidden = params["W1"].shape[1]
    num_classes = params["W3"].shape[1]
    n_pad = int(_round_up(num_classes, LANE))

    w3p = jnp.zeros((hidden, n_pad), jnp.float32).at[:, :num_classes].set(params["W3"])
    b3p = jnp.zeros((1, n_pad), jnp.float32).at[:, :num_classes].set(params["b3"])

    prepped = {
        "W1": params["W1"].astype(jnp.bfloat16),
        "b1": params["b1"],
        "W2": params["W2"].astype(jnp.bfloat16),
        "b2": params["b2"],
        "W3": w3p.astype(jnp.bfloat16),
        "b3": b3p,
    }
    return prepped, num_classes


@functools.partial(jax.jit, static_argnames=("num_classes", "tile_b"))
def neural_net_forward(x, prepped, num_classes, tile_b=1024):
    """x: (B, input_size) float32. prepped: output of prepare_params."""
    B, input_size = x.shape
    hidden = prepped["W1"].shape[1]
    n_pad = prepped["W3"].shape[1]

    # ---- batch tiling ----
    # Cap the tile at half the batch (rounded up to the bf16 sublane) so the
    # grid keeps >= 2 "parallel" steps for v7x's two TensorCores, while still
    # collapsing to a single small tile for tiny B.
    tb = min(tile_b, int(_round_up(pl.cdiv(B, 2), SUBLANE_BF16)))
    b_pad = int(_round_up(B, tb))
    xp = x if b_pad == B else jnp.pad(x, ((0, b_pad - B), (0, 0)))

    grid = (b_pad // tb,)
    out = pl.pallas_call(
        mlp_kernel,
        out_shape=jax.ShapeDtypeStruct((b_pad, n_pad), jnp.bfloat16),
        grid_spec=pltpu.PrefetchScalarGridSpec(
            num_scalar_prefetch=0,
            grid=grid,
            in_specs=[
                # x tile: marches over the batch (f32; cast to bf16 in-kernel)
                pl.BlockSpec((tb, input_size), lambda i: (i, 0)),
                # weights / biases: whole array, VMEM-resident across the grid
                pl.BlockSpec((input_size, hidden), lambda i: (0, 0)),
                pl.BlockSpec((1, hidden), lambda i: (0, 0)),
                pl.BlockSpec((hidden, hidden), lambda i: (0, 0)),
                pl.BlockSpec((1, hidden), lambda i: (0, 0)),
                pl.BlockSpec((hidden, n_pad), lambda i: (0, 0)),
                pl.BlockSpec((1, n_pad), lambda i: (0, 0)),
            ],
            out_specs=pl.BlockSpec((tb, n_pad), lambda i: (i, 0)),
        ),
        compiler_params=pltpu.CompilerParams(
            dimension_semantics=("parallel",),      # megacore on v7x
            vmem_limit_bytes=32 * 1024 * 1024,      # covers big tiles on v5e too
        ),
    )(xp, prepped["W1"], prepped["b1"], prepped["W2"], prepped["b2"],
      prepped["W3"], prepped["b3"])

    # Slice off batch/class padding and return f32 logits (tiny fused op).
    return out[:B, :num_classes].astype(jnp.float32)


def reference_forward_bf16(x, params):
    """Plain-JAX reference with the same bf16-operand / f32-accum semantics,
    including the final bf16 store of the logits."""
    xb = x.astype(jnp.bfloat16)
    w1 = params["W1"].astype(jnp.bfloat16)
    w2 = params["W2"].astype(jnp.bfloat16)
    w3 = params["W3"].astype(jnp.bfloat16)
    h1 = jnp.maximum(
        jnp.dot(xb, w1, preferred_element_type=jnp.float32) + params["b1"], 0.0)
    h2 = jnp.maximum(
        jnp.dot(h1.astype(jnp.bfloat16), w2, preferred_element_type=jnp.float32)
        + params["b2"], 0.0)
    out = (jnp.dot(h2.astype(jnp.bfloat16), w3, preferred_element_type=jnp.float32)
           + params["b3"])
    return out.astype(jnp.bfloat16).astype(jnp.float32)


def reference_forward_f32(x, params):
    h1 = jnp.maximum(x @ params["W1"] + params["b1"], 0.0)
    h2 = jnp.maximum(h1 @ params["W2"] + params["b2"], 0.0)
    return h2 @ params["W3"] + params["b3"]


def init_params(key, input_size, hidden_size, num_classes):
    """Matches the PyTorch module's __init__: kaiming_normal_ weights,
    nn.Linear default uniform(-1/sqrt(fan_in), 1/sqrt(fan_in)) biases."""
    ks = jax.random.split(key, 6)

    def kaiming(k, fan_in, fan_out):
        std = (2.0 / fan_in) ** 0.5
        # stored as (in, out) = transpose of PyTorch (out, in)
        return std * jax.random.normal(k, (fan_in, fan_out), dtype=jnp.float32)

    def bias(k, fan_in, fan_out):
        bound = 1.0 / (fan_in ** 0.5)
        return jax.random.uniform(k, (1, fan_out), dtype=jnp.float32,
                                  minval=-bound, maxval=bound)

    return {
        "W1": kaiming(ks[0], input_size, hidden_size),
        "b1": bias(ks[1], input_size, hidden_size),
        "W2": kaiming(ks[2], hidden_size, hidden_size),
        "b2": bias(ks[3], hidden_size, hidden_size),
        "W3": kaiming(ks[4], hidden_size, num_classes),
        "b3": bias(ks[5], hidden_size, num_classes),
    }


if __name__ == "__main__":
    input_size, hidden_size, num_classes = 64, 32, 16

    key = jax.random.PRNGKey(0)
    k_params, k_x1, k_x2 = jax.random.split(key, 3)
    params = init_params(k_params, input_size, hidden_size, num_classes)

    # One-time parameter preparation (padding + bf16 casts) hoisted out of the
    # per-call forward.
    prepped, n_cls = prepare_params(params)
    prepped = jax.tree_util.tree_map(jax.block_until_ready, prepped)

    # --- small batch (spec-sized) ---
    batch = 8
    x = jax.random.normal(k_x1, (batch, input_size), dtype=jnp.float32)
    out = jax.block_until_ready(neural_net_forward(x, prepped, n_cls))
    assert out.shape == (batch, num_classes)
    ref_bf16 = reference_forward_bf16(x, params)
    ref_f32 = reference_forward_f32(x, params)
    assert jnp.allclose(out, ref_bf16, atol=1e-2, rtol=1e-2)
    assert jnp.allclose(out, ref_f32, atol=7e-2, rtol=7e-2)

    # --- larger batch: exercises the multi-step batch grid / pipelining ---
    batch2 = 512
    x2 = jax.random.normal(k_x2, (batch2, input_size), dtype=jnp.float32)
    out2 = jax.block_until_ready(neural_net_forward(x2, prepped, n_cls))
    assert out2.shape == (batch2, num_classes)
    ref2 = reference_forward_bf16(x2, params)
    assert jnp.allclose(out2, ref2, atol=1e-2, rtol=1e-2)

    print("KERNEL_OK")
</pallas_src>

<mosaic_0001>
module attributes {stable_mosaic.version = 11 : i64} {
  func.func @mlp_kernel(%arg0: i32, %arg1: memref<16x64xf32, #tpu.memory_space<vmem>>, %arg2: memref<64x32xbf16, #tpu.memory_space<vmem>>, %arg3: memref<1x32xf32, #tpu.memory_space<vmem>>, %arg4: memref<32x32xbf16, #tpu.memory_space<vmem>>, %arg5: memref<1x32xf32, #tpu.memory_space<vmem>>, %arg6: memref<32x128xbf16, #tpu.memory_space<vmem>>, %arg7: memref<1x128xf32, #tpu.memory_space<vmem>>, %arg8: memref<16x128xbf16, #tpu.memory_space<vmem>>) attributes {dimension_semantics = [#tpu.dimension_semantics<parallel>], iteration_bounds = array<i64: 1>, scalar_prefetch = 0 : i64, scratch_operands = 0 : i64, tpu.core_type = #tpu.core_type<tc>, window_params = [{transform_indices = @transform_0, window_bounds = array<i64: 16, 64>}, {pipeline_mode = #tpu.pipeline_mode<synchronous>, transform_indices = @transform_1, window_bounds = array<i64: 64, 32>}, {pipeline_mode = #tpu.pipeline_mode<synchronous>, transform_indices = @transform_2, window_bounds = array<i64: 1, 32>}, {pipeline_mode = #tpu.pipeline_mode<synchronous>, transform_indices = @transform_3, window_bounds = array<i64: 32, 32>}, {pipeline_mode = #tpu.pipeline_mode<synchronous>, transform_indices = @transform_4, window_bounds = array<i64: 1, 32>}, {pipeline_mode = #tpu.pipeline_mode<synchronous>, transform_indices = @transform_5, window_bounds = array<i64: 32, 128>}, {pipeline_mode = #tpu.pipeline_mode<synchronous>, transform_indices = @transform_6, window_bounds = array<i64: 1, 128>}, {transform_indices = @transform_7, window_bounds = array<i64: 16, 128>}]} {
    %c0 = arith.constant 0 : index
    %c0_0 = arith.constant 0 : index
    %0 = vector.load %arg1[%c0, %c0_0] : memref<16x64xf32, #tpu.memory_space<vmem>>, vector<16x64xf32>
    %1 = arith.truncf %0 : vector<16x64xf32> to vector<16x64xbf16>
    %c0_1 = arith.constant 0 : index
    %c0_2 = arith.constant 0 : index
    %2 = vector.load %arg2[%c0_1, %c0_2] : memref<64x32xbf16, #tpu.memory_space<vmem>>, vector<64x32xbf16>
    %cst = arith.constant dense<0.000000e+00> : vector<16x32xf32>
    %3 = tpu.matmul %1, %2, %cst {dimension_numbers = #tpu.dot_dimension_numbers<[1], [0], [0], [1], [0, 0, 1, 1], [], []>} : vector<16x64xbf16>, vector<64x32xbf16>, vector<16x32xf32> -> vector<16x32xf32>
    %c0_3 = arith.constant 0 : index
    %c0_4 = arith.constant 0 : index
    %4 = vector.load %arg3[%c0_3, %c0_4] : memref<1x32xf32, #tpu.memory_space<vmem>>, vector<1x32xf32>
    %5 = vector.broadcast %4 : vector<1x32xf32> to vector<16x32xf32>
    %6 = arith.addf %3, %5 : vector<16x32xf32>
    %cst_5 = arith.constant 0.000000e+00 : f32
    %7 = vector.broadcast %cst_5 : f32 to vector<16x32xf32>
    %8 = arith.maximumf %6, %7 : vector<16x32xf32>
    %9 = arith.truncf %8 : vector<16x32xf32> to vector<16x32xbf16>
    %c0_6 = arith.constant 0 : index
    %c0_7 = arith.constant 0 : index
    %10 = vector.load %arg4[%c0_6, %c0_7] : memref<32x32xbf16, #tpu.memory_space<vmem>>, vector<32x32xbf16>
    %cst_8 = arith.constant dense<0.000000e+00> : vector<16x32xf32>
    %11 = tpu.matmul %9, %10, %cst_8 {dimension_numbers = #tpu.dot_dimension_numbers<[1], [0], [0], [1], [0, 0, 1, 1], [], []>} : vector<16x32xbf16>, vector<32x32xbf16>, vector<16x32xf32> -> vector<16x32xf32>
    %c0_9 = arith.constant 0 : index
    %c0_10 = arith.constant 0 : index
    %12 = vector.load %arg5[%c0_9, %c0_10] : memref<1x32xf32, #tpu.memory_space<vmem>>, vector<1x32xf32>
    %13 = vector.broadcast %12 : vector<1x32xf32> to vector<16x32xf32>
    %14 = arith.addf %11, %13 : vector<16x32xf32>
    %cst_11 = arith.constant 0.000000e+00 : f32
    %15 = vector.broadcast %cst_11 : f32 to vector<16x32xf32>
    %16 = arith.maximumf %14, %15 : vector<16x32xf32>
    %17 = arith.truncf %16 : vector<16x32xf32> to vector<16x32xbf16>
    %c0_12 = arith.constant 0 : index
    %c0_13 = arith.constant 0 : index
    %18 = vector.load %arg6[%c0_12, %c0_13] : memref<32x128xbf16, #tpu.memory_space<vmem>>, vector<32x128xbf16>
    %cst_14 = arith.constant dense<0.000000e+00> : vector<16x128xf32>
    %19 = tpu.matmul %17, %18, %cst_14 {dimension_numbers = #tpu.dot_dimension_numbers<[1], [0], [0], [1], [0, 0, 1, 1], [], []>} : vector<16x32xbf16>, vector<32x128xbf16>, vector<16x128xf32> -> vector<16x128xf32>
    %c0_15 = arith.constant 0 : index
    %c0_16 = arith.constant 0 : index
    %20 = vector.load %arg7[%c0_15, %c0_16] : memref<1x128xf32, #tpu.memory_space<vmem>>, vector<1x128xf32>
    %21 = vector.broadcast %20 : vector<1x128xf32> to vector<16x128xf32>
    %22 = arith.addf %19, %21 : vector<16x128xf32>
    %23 = arith.truncf %22 : vector<16x128xf32> to vector<16x128xbf16>
    %c0_17 = arith.constant 0 : index
    %c0_18 = arith.constant 0 : index
    %24 = vector.load %arg8[%c0_17, %c0_18] : memref<16x128xbf16, #tpu.memory_space<vmem>>, vector<16x128xbf16>
    tpu.vector_store %arg8[%c0_17, %c0_18], %23 {strides = array<i32>} : memref<16x128xbf16, #tpu.memory_space<vmem>>, vector<16x128xbf16>,
    return
  }
  func.func @transform_0(%arg0: i32) -> (i32, i32) {
    %c0_i32 = arith.constant 0 : i32
    %c0_i32_0 = arith.constant 0 : i32
    return %arg0, %c0_i32 : i32, i32
  }
  func.func @transform_1(%arg0: i32) -> (i32, i32) {
    %c0_i32 = arith.constant 0 : i32
    %c0_i32_0 = arith.constant 0 : i32
    %c0_i32_1 = arith.constant 0 : i32
    return %c0_i32, %c0_i32_0 : i32, i32
  }
  func.func @transform_2(%arg0: i32) -> (i32, i32) {
    %c0_i32 = arith.constant 0 : i32
    %c0_i32_0 = arith.constant 0 : i32
    %c0_i32_1 = arith.constant 0 : i32
    return %c0_i32, %c0_i32_0 : i32, i32
  }
  func.func @transform_3(%arg0: i32) -> (i32, i32) {
    %c0_i32 = arith.constant 0 : i32
    %c0_i32_0 = arith.constant 0 : i32
    %c0_i32_1 = arith.constant 0 : i32
    return %c0_i32, %c0_i32_0 : i32, i32
  }
  func.func @transform_4(%arg0: i32) -> (i32, i32) {
    %c0_i32 = arith.constant 0 : i32
    %c0_i32_0 = arith.constant 0 : i32
    %c0_i32_1 = arith.constant 0 : i32
    return %c0_i32, %c0_i32_0 : i32, i32
  }
  func.func @transform_5(%arg0: i32) -> (i32, i32) {
    %c0_i32 = arith.constant 0 : i32
    %c0_i32_0 = arith.constant 0 : i32
    %c0_i32_1 = arith.constant 0 : i32
    return %c0_i32, %c0_i32_0 : i32, i32
  }
  func.func @transform_6(%arg0: i32) -> (i32, i32) {
    %c0_i32 = arith.constant 0 : i32
    %c0_i32_0 = arith.constant 0 : i32
    %c0_i32_1 = arith.constant 0 : i32
    return %c0_i32, %c0_i32_0 : i32, i32
  }
  func.func @transform_7(%arg0: i32) -> (i32, i32) {
    %c0_i32 = arith.constant 0 : i32
    %c0_i32_0 = arith.constant 0 : i32
    return %arg0, %c0_i32 : i32, i32
  }
}

</mosaic_0001>

<llo_original>
// kernel: neural_net_forward.1
$region0: #{neural_net_forward.1}
  #allocation0 [shape = 'u32[]', space=smem, size = 0x4, offset = 0x4, fixed_abs, tag = 'smem constant byte address 0x4 - core index']
  #allocation1 [shape = 'u32[72,128]{1,0:T(1,128)}', space=vmem, size = 0x9000, scoped, tag = 'internal scratch']
  %s0 = inlined_call_operand.vmem [shape: f32[16,64], index: 0, kind: input, shape index: {}]
  %s1 = inlined_call_operand.vmem [shape: bf16[64,32], index: 1, kind: input, shape index: {}]
  %s2 = inlined_call_operand.vmem [shape: f32[1,32], index: 2, kind: input, shape index: {}]
  %s3 = inlined_call_operand.vmem [shape: bf16[32,32], index: 3, kind: input, shape index: {}]
  %s4 = inlined_call_operand.vmem [shape: f32[1,32], index: 4, kind: input, shape index: {}]
  %s5 = inlined_call_operand.vmem [shape: bf16[32,128], index: 5, kind: input, shape index: {}]
  %s6 = inlined_call_operand.vmem [shape: f32[1,128], index: 6, kind: input, shape index: {}]
  %s7 = inlined_call_operand.vmem [shape: bf16[16,128], index: 7, kind: output, shape index: {}]
  %s8 = sld [smem:[#allocation0]]
  $region38: #{neural_net_forward.1} parent=0
    _
  %s10 = ssub.s32 1, %s8
  %s11 = scalar_select 0, %s10, %s8
  // Predicated region
  $region2: #{neural_net_forward.1} parent=0 // pred_check
    _
  $region3: #{neural_net_forward.1} parent=0 // pred_check_branch
    %13 = sbr.rel (0) target = $region5
  $region4: #{neural_net_forward.1} parent=0 // pred_region
    _
  $region5: #{neural_net_forward.1} parent=0 // pred_fallthru
    _
  // Predicated region
  $region6: #{neural_net_forward.1} parent=0 // pred_check
    _
  $region7: #{neural_net_forward.1} parent=0 // pred_check_branch
    %15 = sbr.rel (0) target = $region9
  $region8: #{neural_net_forward.1} parent=0 // pred_region
    _
  $region9: #{neural_net_forward.1} parent=0 // pred_fallthru
    _
  // Predicated region
  $region10: #{neural_net_forward.1} parent=0 // pred_check
    _
  $region11: #{neural_net_forward.1} parent=0 // pred_check_branch
    %17 = sbr.rel (0) target = $region13
  $region12: #{neural_net_forward.1} parent=0 // pred_region
    _
  $region13: #{neural_net_forward.1} parent=0 // pred_fallthru
    _
  // Predicated region
  $region14: #{neural_net_forward.1} parent=0 // pred_check
    _
  $region15: #{neural_net_forward.1} parent=0 // pred_check_branch
    %19 = sbr.rel (0) target = $region17
  $region16: #{neural_net_forward.1} parent=0 // pred_region
    _
  $region17: #{neural_net_forward.1} parent=0 // pred_fallthru
    _
  // Predicated region
  $region18: #{neural_net_forward.1} parent=0 // pred_check
    _
  $region19: #{neural_net_forward.1} parent=0 // pred_check_branch
    %21 = sbr.rel (0) target = $region21
  $region20: #{neural_net_forward.1} parent=0 // pred_region
    _
  $region21: #{neural_net_forward.1} parent=0 // pred_fallthru
    _
  // Predicated region
  $region22: #{neural_net_forward.1} parent=0 // pred_check
    _
  $region23: #{neural_net_forward.1} parent=0 // pred_check_branch
    %23 = sbr.rel (0) target = $region25
  $region24: #{neural_net_forward.1} parent=0 // pred_region
    _
  $region25: #{neural_net_forward.1} parent=0 // pred_fallthru
    _
  // Predicated region
  $region26: #{neural_net_forward.1} parent=0 // pred_check
    _
  $region27: #{neural_net_forward.1} parent=0 // pred_check_branch
    %25 = sbr.rel (0) target = $region29
  $region28: #{neural_net_forward.1} parent=0 // pred_region
    _
  $region29: #{neural_net_forward.1} parent=0 // pred_fallthru
    _
  %v27 = vld [vmem:[%s0] sm:$0xff]
  %v28 = vld [vmem:[%s0 + $0x8] sm:$0xff]
  %v29 = vpack.c.bf16 %v28, %v27
  %v30 = vld [vmem:[%s1] sm:$0xf]
  %v31 = vld [vmem:[%s1 + $0x4] sm:$0xf]
  %v32 = vld [vmem:[%s1 + $0x8] sm:$0xf]
  %v33 = vld [vmem:[%s1 + $0xc] sm:$0xf]
  %v34 = vld [vmem:[%s1 + $0x10] sm:$0xf]
  %v35 = vld [vmem:[%s1 + $0x14] sm:$0xf]
  %v36 = vld [vmem:[%s1 + $0x18] sm:$0xf]
  %v37 = vld [vmem:[%s1 + $0x1c] sm:$0xf]
  %v38 = vld [vmem:[%s2] sm:$0x1]
  %v40 = vperm.slane %v38, 0
  %v50 = vunpack.c.l.b16 %v30
  %v51 = vunpack.c.l.b16 %v31
  %v52 = vunpack.c.l.b16 %v32
  %v53 = vunpack.c.l.b16 %v33
  %v54 = vunpack.c.l.b16 %v34
  %v55 = vunpack.c.l.b16 %v35
  %v56 = vunpack.c.l.b16 %v36
  %v57 = vunpack.c.l.b16 %v37
  %v58 = vpack.c.b16 %v51, %v50
  %v59 = vpack.c.b16 %v53, %v52
  %v60 = vpack.c.b16 %v55, %v54
  %v61 = vpack.c.b16 %v57, %v56
  %vm66 = vcmask 523264
  %v68 = vsel %vm66, %v29, 0
  %70 = vmatpush.bf16.msra.mxu0 0
  %71 = vmatpush.bf16.msra.mxu0 0
  %72 = vmatpush.bf16.msra.mxu0 0
  %73 = vmatpush.bf16.msra.mxu0 0
  %74 = vmatpush.bf16.msra.mxu0 %v61
  %75 = vmatpush.bf16.msra.mxu0 %v60
  %76 = vmatpush.bf16.msra.mxu0 %v59
  %77 = vmatpush.bf16.msra.mxu0 %v58
  %78 = vmatmul.bf16.gmra.mxu0 %v68
  %v79 = vpop.f32.mrf.mxu0
  %v80 = vadd.f32 %v40, %v79
  %v81 = vpop.f32.mrf.mxu0
  %v82 = vadd.f32 %v40, %v81
  %83 = vdwg.mxu0
  %v84 = vmax.f32 %v80, 0.0
  %v85 = vmax.f32 %v82, 0.0
  %v86 = vpack.c.bf16 %v85, %v84
  %v87 = vld [vmem:[%s3] sm:$0xf]
  %v88 = vld [vmem:[%s3 + $0x4] sm:$0xf]
  %v89 = vld [vmem:[%s3 + $0x8] sm:$0xf]
  %v90 = vld [vmem:[%s3 + $0xc] sm:$0xf]
  %v91 = vld [vmem:[%s4] sm:$0x1]
  %v93 = vperm.slane %v91, 0
  %v99 = vunpack.c.l.b16 %v87
  %v100 = vunpack.c.l.b16 %v88
  %v101 = vunpack.c.l.b16 %v89
  %v102 = vunpack.c.l.b16 %v90
  %v103 = vpack.c.b16 %v100, %v99
  %v104 = vpack.c.b16 %v102, %v101
  %vm107 = vcmask 261120
  %v109 = vsel %vm107, %v86, 0
  %111 = vmatpush.bf16.msra.mxu0 0
  %112 = vmatpush.bf16.msra.mxu0 0
  %113 = vmatpush.bf16.msra.mxu0 0
  %114 = vmatpush.bf16.msra.mxu0 0
  %115 = vmatpush.bf16.msra.mxu0 0
  %116 = vmatpush.bf16.msra.mxu0 0
  %117 = vmatpush.bf16.msra.mxu0 %v104
  %118 = vmatpush.bf16.msra.mxu0 %v103
  %119 = vmatmul.bf16.gmra.mxu0 %v109
  %v120 = vpop.f32.mrf.mxu0
  %v121 = vadd.f32 %v93, %v120
  %v122 = vpop.f32.mrf.mxu0
  %v123 = vadd.f32 %v93, %v122
  %124 = vdwg.mxu0
  %v125 = vmax.f32 %v121, 0.0
  %v126 = vmax.f32 %v123, 0.0
  %v127 = vpack.c.bf16 %v126, %v125
  %v128 = vld [vmem:[%s5] sm:$0xf]
  %v129 = vld [vmem:[%s5 + $0x4] sm:$0xf]
  %v130 = vld [vmem:[%s5 + $0x8] sm:$0xf]
  %v131 = vld [vmem:[%s5 + $0xc] sm:$0xf]
  %v132 = vld [vmem:[%s6] sm:$0x1]
  %v134 = vperm.slane %v132, 0
  %v140 = vunpack.c.l.b16 %v128
  %v141 = vunpack.c.l.b16 %v129
  %v142 = vunpack.c.l.b16 %v130
  %v143 = vunpack.c.l.b16 %v131
  %v144 = vpack.c.b16 %v141, %v140
  %v145 = vpack.c.b16 %v143, %v142
  %v149 = vsel %vm107, %v127, 0
  %151 = vmatpush.bf16.msra.mxu0 0
  %152 = vmatpush.bf16.msra.mxu0 0
  %153 = vmatpush.bf16.msra.mxu0 0
  %154 = vmatpush.bf16.msra.mxu0 0
  %155 = vmatpush.bf16.msra.mxu0 0
  %156 = vmatpush.bf16.msra.mxu0 0
  %157 = vmatpush.bf16.msra.mxu0 %v145
  %158 = vmatpush.bf16.msra.mxu0 %v144
  %159 = vmatmul.bf16.gmra.mxu0 %v149
  %v160 = vpop.f32.mrf.mxu0
  %v161 = vadd.f32 %v134, %v160
  %v162 = vpop.f32.mrf.mxu0
  %v163 = vadd.f32 %v134, %v162
  %164 = vdwg.mxu0
  %v165 = vpack.c.bf16 %v161, %v161
  %v166 = vpack.c.bf16 %v163, %v163
  %167 = vst [vmem:[%s7] sm:$0xf] %v165
  %168 = vst [vmem:[%s7 + $0x4] sm:$0xf] %v166
  // Predicated region
  $region30: #{neural_net_forward.1} parent=0 // pred_check
    _
  $region31: #{neural_net_forward.1} parent=0 // pred_check_branch
    %170 = sbr.rel (0) target = $region33
  $region32: #{neural_net_forward.1} parent=0 // pred_region
    _
  $region33: #{neural_net_forward.1} parent=0 // pred_fallthru
    _
  // Predicated region
  $region34: #{neural_net_forward.1} parent=0 // pred_check
    _
  $region35: #{neural_net_forward.1} parent=0 // pred_check_branch
    %172 = sbr.rel (0) target = $region37
  $region36: #{neural_net_forward.1} parent=0 // pred_region
    _
  $region37: #{neural_net_forward.1} parent=0 // pred_fallthru
    _

</llo_original>
